<compile_context>
chip_gen: v7x
topology: tpu7x:2x2x1
jax: 0.10.0
libtpu: 0.0.40
codegen_flags: <defaults>
</compile_context>

<pallas_src>
import jax
import jax.numpy as jnp
from jax.experimental import pallas as pl
from jax.experimental.pallas import tpu as pltpu


def _max_logit_kernel(x_ref, w_ref, b_ref, logits_ref, ood_ref):
    # x_ref:      (Cin, T)  input pixel tile (native activation dtype, batch squeezed)
    # w_ref:      (C, Cin)  1x1 conv weight (same dtype as x -> native MXU path)
    # b_ref:      (C, 1)    conv bias (f32)
    # logits_ref: (C, T)    output logits tile
    # ood_ref:    (1, T)    output OOD score tile
    logits_f32 = jnp.dot(w_ref[...], x_ref[...],
                         preferred_element_type=jnp.float32) + b_ref[...]   # (C, T) f32
    logits_ref[...] = logits_f32.astype(logits_ref.dtype)
    # ood = -max over classes (torch.max(logits, dim=1).values, negated),
    # computed from the in-register f32 logits before the output cast.
    ood_ref[...] = (-jnp.max(logits_f32, axis=0, keepdims=True)).astype(ood_ref.dtype)


def _vmem_budgets():
    """Generation-aware VMEM budgets: (tile working-set budget, vmem_limit clamp)."""
    try:
        cap = pltpu.get_tpu_info().vmem_capacity_bytes
    except Exception:
        cap = 64 << 20  # assume the smallest (v7x-like) if the query fails
    tile_budget = (24 << 20) if cap >= (96 << 20) else (10 << 20)
    limit_clamp = min(cap // 2, 64 << 20)
    return tile_budget, limit_clamp


def _pick_pixel_tile(hw_pad, bytes_per_pixel_db, *, tile_budget, max_tile=16384):
    """Largest lane tile (multiple of 128, dividing hw_pad, <= max_tile) whose
    double-buffered x/logits/ood working set stays within the VMEM budget."""
    cap = max(128, min(max_tile, tile_budget // max(bytes_per_pixel_db, 1)))
    if hw_pad <= cap:
        return hw_pad
    for t in (16384, 8192, 4096, 2048, 1024, 512, 256, 128):
        if t <= cap and hw_pad % t == 0:
            return t
    return 128  # hw_pad is always a multiple of 128 after padding


def max_logit_forward(x_nchw, weight, bias, *, pixel_tile=None, out_dtype=None):
    """x_nchw: (B, Cin, H, W). Returns (logits (B,C,H,W), ood_scores (B,1,H,W))."""
    B, Cin, H, W = x_nchw.shape
    C = weight.shape[0]
    HW = H * W

    act_dtype = x_nchw.dtype
    out_dtype = act_dtype if out_dtype is None else out_dtype

    # Pad the pixel axis to a multiple of 128 (lane-dense tiles); slice back later.
    HW_pad = ((HW + 127) // 128) * 128
    x_flat = x_nchw.reshape(B, Cin, HW)
    if HW_pad != HW:
        x_flat = jnp.pad(x_flat, ((0, 0), (0, 0), (0, HW_pad - HW)))

    w = weight.astype(act_dtype)                 # tiny; match MXU input dtype
    b_col = bias.reshape(C, 1).astype(jnp.float32)

    x_bytes = jnp.dtype(act_dtype).itemsize
    o_bytes = jnp.dtype(out_dtype).itemsize
    bytes_per_pixel_db = 2 * (x_bytes * Cin + o_bytes * (C + 1))   # 2x double-buffer

    tile_budget, limit_clamp = _vmem_budgets()
    if pixel_tile is None:
        pixel_tile = _pick_pixel_tile(HW_pad, bytes_per_pixel_db,
                                      tile_budget=tile_budget)
    assert HW_pad % pixel_tile == 0, "padded H*W must be divisible by the pixel tile"

    # Pixel-tile axis first so v7x's two TensorCores split the long axis even
    # when B is 1 or odd; batch is the second (also parallel) axis.
    grid = (HW_pad // pixel_tile, B)

    working_set = pixel_tile * bytes_per_pixel_db
    param_bytes = x_bytes * C * Cin + 4 * C
    vmem_limit = int(min(max(working_set + param_bytes + (2 << 20), 16 << 20),
                         limit_clamp))

    cost = pl.CostEstimate(
        flops=2 * B * C * Cin * HW_pad,
        transcendentals=0,
        bytes_accessed=B * HW_pad * (x_bytes * Cin + o_bytes * (C + 1)) + param_bytes,
    )

    logits_flat, ood_flat = pl.pallas_call(
        _max_logit_kernel,
        out_shape=(
            jax.ShapeDtypeStruct((B, C, HW_pad), out_dtype),
            jax.ShapeDtypeStruct((B, 1, HW_pad), out_dtype),
        ),
        grid_spec=pltpu.PrefetchScalarGridSpec(
            num_scalar_prefetch=0,
            grid=grid,
            in_specs=[
                pl.BlockSpec((pl.Squeezed(), Cin, pixel_tile),
                             lambda ti, bi: (bi, 0, ti)),                 # x
                pl.BlockSpec((C, Cin), lambda ti, bi: (0, 0)),            # weight
                pl.BlockSpec((C, 1), lambda ti, bi: (0, 0)),              # bias
            ],
            out_specs=[
                pl.BlockSpec((pl.Squeezed(), C, pixel_tile),
                             lambda ti, bi: (bi, 0, ti)),                 # logits
                pl.BlockSpec((pl.Squeezed(), 1, pixel_tile),
                             lambda ti, bi: (bi, 0, ti)),                 # ood
            ],
        ),
        compiler_params=pltpu.CompilerParams(
            dimension_semantics=("parallel", "parallel"),
            vmem_limit_bytes=vmem_limit,
        ),
        cost_estimate=cost,
    )(x_flat, w, b_col)

    logits = logits_flat[:, :, :HW].reshape(B, C, H, W)
    ood = ood_flat[:, :, :HW].reshape(B, 1, H, W)
    return logits, ood


def _reference(x_nchw, weight, bias):
    B, Cin, H, W = x_nchw.shape
    C = weight.shape[0]
    x32 = x_nchw.astype(jnp.float32).reshape(B, Cin, H * W)
    logits = jnp.einsum("ck,bkp->bcp", weight.astype(jnp.float32), x32) \
        + bias.astype(jnp.float32)[None, :, None]
    ood = -jnp.max(logits, axis=1)
    return logits.reshape(B, C, H, W), ood.reshape(B, 1, H, W)


if __name__ == "__main__":
    key = jax.random.PRNGKey(0)
    kx, kw, kb = jax.random.split(key, 3)

    B, Cin, H, W = 2, 8, 16, 16          # small NCHW input
    C = 16                               # num_classes of the segmenter head

    x = jax.random.normal(kx, (B, Cin, H, W), dtype=jnp.float32)
    weight = jax.random.normal(kw, (C, Cin), dtype=jnp.float32) * 0.1
    bias = jax.random.normal(kb, (C,), dtype=jnp.float32) * 0.1

    # 1) f32 path: exact match against the reference.
    logits, ood_scores = max_logit_forward(x, weight, bias)
    jax.block_until_ready((logits, ood_scores))
    ref_logits, ref_ood = _reference(x, weight, bias)
    assert logits.shape == (B, C, H, W)
    assert ood_scores.shape == (B, 1, H, W)
    assert jnp.allclose(logits, ref_logits, atol=1e-4, rtol=1e-4)
    assert jnp.allclose(ood_scores, ref_ood, atol=1e-4, rtol=1e-4)

    # 2) bf16 activation path (typical backbone output): halves HBM traffic.
    x_bf16 = x.astype(jnp.bfloat16)
    logits_b, ood_b = max_logit_forward(x_bf16, weight, bias)
    jax.block_until_ready((logits_b, ood_b))
    assert logits_b.dtype == jnp.bfloat16 and ood_b.dtype == jnp.bfloat16
    assert jnp.allclose(logits_b.astype(jnp.float32), ref_logits, atol=5e-2, rtol=5e-2)
    assert jnp.allclose(ood_b.astype(jnp.float32), ref_ood, atol=5e-2, rtol=5e-2)

    # 3) Non-128-divisible H*W: exercises the pad/slice fast path.
    Ho, Wo = 10, 10
    x_odd = jax.random.normal(kx, (B, Cin, Ho, Wo), dtype=jnp.float32)
    logits_o, ood_o = max_logit_forward(x_odd, weight, bias)
    jax.block_until_ready((logits_o, ood_o))
    ref_logits_o, ref_ood_o = _reference(x_odd, weight, bias)
    assert logits_o.shape == (B, C, Ho, Wo)
    assert ood_o.shape == (B, 1, Ho, Wo)
    assert jnp.allclose(logits_o, ref_logits_o, atol=1e-4, rtol=1e-4)
    assert jnp.allclose(ood_o, ref_ood_o, atol=1e-4, rtol=1e-4)

    print("KERNEL_OK")
</pallas_src>

<mosaic_0001>
module attributes {stable_mosaic.version = 11 : i64} {
  func.func @_max_logit_kernel(%arg0: i32, %arg1: i32, %arg2: memref<1x8x256xf32, #tpu.memory_space<vmem>>, %arg3: memref<16x8xf32, #tpu.memory_space<vmem>>, %arg4: memref<16x1xf32, #tpu.memory_space<vmem>>, %arg5: memref<1x16x256xf32, #tpu.memory_space<vmem>>, %arg6: memref<1x1x256xf32, #tpu.memory_space<vmem>>) attributes {dimension_semantics = [#tpu.dimension_semantics<parallel>, #tpu.dimension_semantics<parallel>], iteration_bounds = array<i64: 1, 2>, scalar_prefetch = 0 : i64, scratch_operands = 0 : i64, tpu.core_type = #tpu.core_type<tc>, window_params = [{transform_indices = @transform_0, window_bounds = array<i64: 1, 8, 256>}, {pipeline_mode = #tpu.pipeline_mode<synchronous>, transform_indices = @transform_1, window_bounds = array<i64: 16, 8>}, {pipeline_mode = #tpu.pipeline_mode<synchronous>, transform_indices = @transform_2, window_bounds = array<i64: 16, 1>}, {transform_indices = @transform_3, window_bounds = array<i64: 1, 16, 256>}, {transform_indices = @transform_4, window_bounds = array<i64: 1, 1, 256>}]} {
    %c0 = arith.constant 0 : index
    %c0_0 = arith.constant 0 : index
    %0 = vector.load %arg3[%c0, %c0_0] : memref<16x8xf32, #tpu.memory_space<vmem>>, vector<16x8xf32>
    %c0_1 = arith.constant 0 : index
    %c0_2 = arith.constant 0 : index
    %c0_3 = arith.constant 0 : index
    %1 = vector.load %arg2[%c0_1, %c0_2, %c0_3] : memref<1x8x256xf32, #tpu.memory_space<vmem>>, vector<1x8x256xf32>
    %2 = vector.shape_cast %1 : vector<1x8x256xf32> to vector<8x256xf32>
    %cst = arith.constant dense<0.000000e+00> : vector<16x256xf32>
    %3 = tpu.matmul %0, %2, %cst {dimension_numbers = #tpu.dot_dimension_numbers<[1], [0], [0], [1], [0, 0, 1, 1], [], []>} : vector<16x8xf32>, vector<8x256xf32>, vector<16x256xf32> -> vector<16x256xf32>
    %c0_4 = arith.constant 0 : index
    %c0_5 = arith.constant 0 : index
    %4 = vector.load %arg4[%c0_4, %c0_5] : memref<16x1xf32, #tpu.memory_space<vmem>>, vector<16x1xf32>
    %5 = vector.broadcast %4 : vector<16x1xf32> to vector<16x256xf32>
    %6 = arith.addf %3, %5 : vector<16x256xf32>
    %c0_6 = arith.constant 0 : index
    %c0_7 = arith.constant 0 : index
    %c0_8 = arith.constant 0 : index
    %7 = vector.load %arg5[%c0_6, %c0_7, %c0_8] : memref<1x16x256xf32, #tpu.memory_space<vmem>>, vector<1x16x256xf32>
    %8 = vector.shape_cast %7 : vector<1x16x256xf32> to vector<16x256xf32>
    %9 = vector.shape_cast %6 : vector<16x256xf32> to vector<1x16x256xf32>
    tpu.vector_store %arg5[%c0_6, %c0_7, %c0_8], %9 {strides = array<i32>} : memref<1x16x256xf32, #tpu.memory_space<vmem>>, vector<1x16x256xf32>,
    %cst_9 = arith.constant dense<0xFF800000> : vector<256xf32>
    %10 = vector.multi_reduction <maximumf>, %6, %cst_9 [0] : vector<16x256xf32> to vector<256xf32>
    %11 = vector.shape_cast %10 : vector<256xf32> to vector<1x256xf32>
    %cst_10 = arith.constant 0.000000e+00 : f32
    %12 = vector.broadcast %cst_10 : f32 to vector<1x256xf32>
    %13 = arith.subf %12, %11 : vector<1x256xf32>
    %c0_11 = arith.constant 0 : index
    %c0_12 = arith.constant 0 : index
    %c0_13 = arith.constant 0 : index
    %14 = vector.load %arg6[%c0_11, %c0_12, %c0_13] : memref<1x1x256xf32, #tpu.memory_space<vmem>>, vector<1x1x256xf32>
    %15 = vector.shape_cast %14 : vector<1x1x256xf32> to vector<1x256xf32>
    %16 = vector.shape_cast %13 : vector<1x256xf32> to vector<1x1x256xf32>
    tpu.vector_store %arg6[%c0_11, %c0_12, %c0_13], %16 {strides = array<i32>} : memref<1x1x256xf32, #tpu.memory_space<vmem>>, vector<1x1x256xf32>,
    return
  }
  func.func @transform_0(%arg0: i32, %arg1: i32) -> (i32, i32, i32) {
    %c0_i32 = arith.constant 0 : i32
    %c0_i32_0 = arith.constant 0 : i32
    return %arg1, %c0_i32, %arg0 : i32, i32, i32
  }
  func.func @transform_1(%arg0: i32, %arg1: i32) -> (i32, i32) {
    %c0_i32 = arith.constant 0 : i32
    %c0_i32_0 = arith.constant 0 : i32
    %c0_i32_1 = arith.constant 0 : i32
    return %c0_i32, %c0_i32_0 : i32, i32
  }
  func.func @transform_2(%arg0: i32, %arg1: i32) -> (i32, i32) {
    %c0_i32 = arith.constant 0 : i32
    %c0_i32_0 = arith.constant 0 : i32
    %c0_i32_1 = arith.constant 0 : i32
    return %c0_i32, %c0_i32_0 : i32, i32
  }
  func.func @transform_3(%arg0: i32, %arg1: i32) -> (i32, i32, i32) {
    %c0_i32 = arith.constant 0 : i32
    %c0_i32_0 = arith.constant 0 : i32
    return %arg1, %c0_i32, %arg0 : i32, i32, i32
  }
  func.func @transform_4(%arg0: i32, %arg1: i32) -> (i32, i32, i32) {
    %c0_i32 = arith.constant 0 : i32
    %c0_i32_0 = arith.constant 0 : i32
    return %arg1, %c0_i32, %arg0 : i32, i32, i32
  }
}

</mosaic_0001>

<llo_original>
// kernel: tpu_custom_call.1
$region0: #{tpu_custom_call.1}
  #allocation0 [shape = 'u32[]', space=smem, size = 0x4, offset = 0x4, fixed_abs, tag = 'smem constant byte address 0x4 - core index']
  #allocation1 [shape = 'u32[144,128]{1,0:T(1,128)}', space=vmem, size = 0x12000, scoped, tag = 'internal scratch']
  %s0 = inlined_call_operand.vmem [shape: f32[2,8,256], index: 0, kind: input, shape index: {}]
  %s1 = inlined_call_operand.vmem [shape: f32[16,8], index: 1, kind: input, shape index: {}]
  %s2 = inlined_call_operand.vmem [shape: f32[16,1], index: 2, kind: input, shape index: {}]
  %s3 = inlined_call_operand.hbm [shape: f32[2,16,256], index: 3, kind: output, shape index: {0}]
  %s4 = inlined_call_operand.hbm [shape: f32[2,1,256], index: 4, kind: output, shape index: {1}]
  %5 = xla_tuple %s3, %s4
  %s6 = sld [smem:[#allocation0]]
  $region53: #{tpu_custom_call.1} parent=0
    _
  %s8 = ssub.s32 1, %s6
  %s9 = scalar_select 0, %s8, %s6
  $region1: #{tpu_custom_call.1} parent=0
    #allocation2 [shape = 'u8[32768]{0}', space=vmem, size = 0x8000, scoped, tag = 'output window, operand 0']
    #allocation3 [shape = 's32[2]{0}', space=sflag, size = 0x8, scoped, tag = 'scoped memory for tpu_custom_call.1']
    #allocation4 [shape = 'u8[2048]{0}', space=vmem, size = 0x800, scoped, tag = 'output window, operand 1']
    #allocation5 [shape = 's32[2]{0}', space=sflag, size = 0x8, scoped, tag = 'scoped memory for tpu_custom_call.1']
    %10 = vsyncpa [#allocation3], 0
    %s11 = scalar_lea.sflag [#allocation3], 1
    %12 = vsyncpa %s11, 0
    %13 = vsyncpa [#allocation5], 0
    %s14 = scalar_lea.sflag [#allocation5], 1
    %15 = vsyncpa %s14, 0
    loop: start=0, step=1, limit=4
    $region2: #{tpu_custom_call.1} parent=1 // loop_pre_header
      _
    $region3: #{tpu_custom_call.1} parent=1 // loop_header
      %s17 = sphi 0, %s21
      %p18 = scmp.ge.s32.totalorder %s17, 4
      %s24 = sphi 0, %s36
      %s25 = sphi 0, %s32
      %s26 = sphi 0, %s24
      %s27 = sphi 0, %s25
      %s28 = sphi 0, %s26
      %s29 = sphi 0, %s27
      %s41 = sphi 0, %s43
      %s44 = sphi 0, %s41
      %s45 = sphi 0, %s44
      %s61 = sphi 0, %s45
      %s65 = sphi 0, %s65
      %s67 = sphi 0, %s65
      %s68 = sphi 0, %s67
      %s82 = sphi 0, %s68
      %s86 = sphi 0, %s86
      %s88 = sphi 0, %s86
      %s89 = sphi 0, %s88
      %s103 = sphi 0, %s89
      %s111 = sphi 0, %s113
      %s114 = sphi 0, %s111
      %s115 = sphi 0, %s114
      %s131 = sphi 0, %s115
      %s139 = sphi 0, %s141
      %s142 = sphi 0, %s139
      %s143 = sphi 0, %s142
      %s159 = sphi 0, %s143
    $region4: #{tpu_custom_call.1} parent=1 // loop_header_branch
      %20 = sbr.rel (%p18) target = $region8
    $region5: #{tpu_custom_call.1} parent=1 // loop_body
      %s22 = ssub.s32 %s17, 1
      %s23 = ssub.s32 %s17, 2
      %s30 = sadd.s32 1, %s25
      %p31 = scmp.ge.s32.totalorder %s30, 2
      %s32 = scalar_select %p31, 0, %s30
      %s33 = sadd.s32 1, %s24
      %s34 = scalar_select %p31, %s33, %s24
      %p35 = scmp.ge.s32.totalorder %s34, 1
      %s36 = scalar_select %p35, 0, %s34
      %s37 = ssub.s32 %s25, %s32
      %s38 = ssub.s32 %s24, %s36
      %s39 = sor.u32 %s37, %s38
      %p40 = scmp.eq.s32.totalorder %s39, 0
      %s42 = sadd.s32 %s41, 1
      %s43 = scalar_select %p40, %s41, %s42
      %p46 = pneg %p40
      %p47 = scmp.eq.s32.totalorder %s17, 1
      %p48 = por %p46, %p47
      %p49 = scmp.ne.s32.totalorder %s41, %s44
      %p50 = scmp.eq.s32.totalorder %s17, 0
      %p51 = por %p49, %p50
      %p52 = scmp.ne.s32.totalorder %s41, %s44
      %p53 = scmp.eq.s32.totalorder %s22, 1
      %p54 = por %p52, %p53
      %p55 = scmp.ne.s32.totalorder %s44, %s45
      %p56 = scmp.eq.s32.totalorder %s22, 0
      %p57 = por %p55, %p56
      %p58 = scmp.ne.s32.totalorder %s44, %s45
      %p59 = scmp.eq.s32.totalorder %s23, 1
      %p60 = por %p58, %p59
      %p62 = scmp.ne.s32.totalorder %s45, %s61
      %p63 = scmp.eq.s32.totalorder %s23, 0
      %p64 = por %p62, %p63
      %s66 = sadd.s32 %s65, 1
      %p69 = scmp.eq.s32.totalorder %s17, 1
      %p70 = scmp.ne.s32.totalorder %s65, %s67
      %p71 = scmp.eq.s32.totalorder %s17, 0
      %p72 = por %p70, %p71
      %p73 = scmp.ne.s32.totalorder %s65, %s67
      %p74 = scmp.eq.s32.totalorder %s22, 1
      %p75 = por %p73, %p74
      %p76 = scmp.ne.s32.totalorder %s67, %s68
      %p77 = scmp.eq.s32.totalorder %s22, 0
      %p78 = por %p76, %p77
      %p79 = scmp.ne.s32.totalorder %s67, %s68
      %p80 = scmp.eq.s32.totalorder %s23, 1
      %p81 = por %p79, %p80
      %p83 = scmp.ne.s32.totalorder %s68, %s82
      %p84 = scmp.eq.s32.totalorder %s23, 0
      %p85 = por %p83, %p84
      %s87 = sadd.s32 %s86, 1
      %p90 = scmp.eq.s32.totalorder %s17, 1
      %p91 = scmp.ne.s32.totalorder %s86, %s88
      %p92 = scmp.eq.s32.totalorder %s17, 0
      %p93 = por %p91, %p92
      %p94 = scmp.ne.s32.totalorder %s86, %s88
      %p95 = scmp.eq.s32.totalorder %s22, 1
      %p96 = por %p94, %p95
      %p97 = scmp.ne.s32.totalorder %s88, %s89
      %p98 = scmp.eq.s32.totalorder %s22, 0
      %p99 = por %p97, %p98
      %p100 = scmp.ne.s32.totalorder %s88, %s89
      %p101 = scmp.eq.s32.totalorder %s23, 1
      %p102 = por %p100, %p101
      %p104 = scmp.ne.s32.totalorder %s89, %s103
      %p105 = scmp.eq.s32.totalorder %s23, 0
      %p106 = por %p104, %p105
      %s107 = ssub.s32 %s25, %s32
      %s108 = ssub.s32 %s24, %s36
      %s109 = sor.u32 %s107, %s108
      %p110 = scmp.eq.s32.totalorder %s109, 0
      %s112 = sadd.s32 %s111, 1
      %s113 = scalar_select %p110, %s111, %s112
      %p116 = pneg %p110
      %p117 = scmp.eq.s32.totalorder %s17, 1
      %p118 = por %p116, %p117
      %p119 = scmp.ne.s32.totalorder %s111, %s114
      %p120 = scmp.eq.s32.totalorder %s17, 0
      %p121 = por %p119, %p120
      %p122 = scmp.ne.s32.totalorder %s111, %s114
      %p123 = scmp.eq.s32.totalorder %s22, 1
      %p124 = por %p122, %p123
      %p125 = scmp.ne.s32.totalorder %s114, %s115
      %p126 = scmp.eq.s32.totalorder %s22, 0
      %p127 = por %p125, %p126
      %p128 = scmp.ne.s32.totalorder %s114, %s115
      %p129 = scmp.eq.s32.totalorder %s23, 1
      %p130 = por %p128, %p129
      %p132 = scmp.ne.s32.totalorder %s115, %s131
      %p133 = scmp.eq.s32.totalorder %s23, 0
      %p134 = por %p132, %p133
      %s135 = ssub.s32 %s25, %s32
      %s136 = ssub.s32 %s24, %s36
      %s137 = sor.u32 %s135, %s136
      %p138 = scmp.eq.s32.totalorder %s137, 0
      %s140 = sadd.s32 %s139, 1
      %s141 = scalar_select %p138, %s139, %s140
      %p144 = pneg %p138
      %p145 = scmp.eq.s32.totalorder %s17, 1
      %p146 = por %p144, %p145
      %p147 = scmp.ne.s32.totalorder %s139, %s142
      %p148 = scmp.eq.s32.totalorder %s17, 0
      %p149 = por %p147, %p148
      %p150 = scmp.ne.s32.totalorder %s139, %s142
      %p151 = scmp.eq.s32.totalorder %s22, 1
      %p152 = por %p150, %p151
      %p153 = scmp.ne.s32.totalorder %s142, %s143
      %p154 = scmp.eq.s32.totalorder %s22, 0
      %p155 = por %p153, %p154
      %p156 = scmp.ne.s32.totalorder %s142, %s143
      %p157 = scmp.eq.s32.totalorder %s23, 1
      %p158 = por %p156, %p157
      %p160 = scmp.ne.s32.totalorder %s143, %s159
      %p161 = scmp.eq.s32.totalorder %s23, 0
      %p162 = por %p160, %p161
      %p163 = scmp.le.s32.totalorder 1, %s17
      %p164 = scmp.lt.s32.totalorder %s17, 3
      %p165 = pnand %p163, %p164
      %p166 = pneg %p165
      // Predicated region
      $region9: #{tpu_custom_call.1} parent=5 // pred_check
        _
      $region10: #{tpu_custom_call.1} parent=5 // pred_check_branch
        %168 = sbr.rel (%p165) target = $region12
      $region11: #{tpu_custom_call.1} parent=5 // pred_region
        %s169 = ssub.s32 %s17, 1
        // Predicated region
        $region13: #{tpu_custom_call.1} parent=11 // pred_check
          %p170 = pneg %p78
        $region14: #{tpu_custom_call.1} parent=11 // pred_check_branch
          %172 = sbr.rel (%p170) target = $region16
        $region15: #{tpu_custom_call.1} parent=11 // pred_region
          _
        $region16: #{tpu_custom_call.1} parent=11 // pred_fallthru
          _
        // Predicated region
        $region17: #{tpu_custom_call.1} parent=11 // pred_check
          %p173 = pneg %p99
        $region18: #{tpu_custom_call.1} parent=11 // pred_check_branch
          %175 = sbr.rel (%p173) target = $region20
        $region19: #{tpu_custom_call.1} parent=11 // pred_region
          _
        $region20: #{tpu_custom_call.1} parent=11 // pred_fallthru
          _
      $region12: #{tpu_custom_call.1} parent=5 // pred_fallthru
        _
      %p176 = scmp.lt.s32.totalorder %s17, 2
      // Predicated region
      $region21: #{tpu_custom_call.1} parent=5 // pred_check
        %p177 = pneg %p176
      $region22: #{tpu_custom_call.1} parent=5 // pred_check_branch
        %179 = sbr.rel (%p177) target = $region24
      $region23: #{tpu_custom_call.1} parent=5 // pred_region
        // Predicated region
        $region25: #{tpu_custom_call.1} parent=23 // pred_check
          %p180 = pneg %p51
        $region26: #{tpu_custom_call.1} parent=23 // pred_check_branch
          %182 = sbr.rel (%p180) target = $region28
        $region27: #{tpu_custom_call.1} parent=23 // pred_region
          %s183 = smul.u32 2, %s24
          %p184 = scmp.lt.s32.totalorder %s25, 1
          %s185 = scalar_select %p184, %s25, 1
          %p186 = scmp.lt.s32.totalorder %s183, 1
          %s187 = scalar_select %p186, %s183, 1
          %s188 = smul.addr %s185, 2
          %s189 = sadd.s32 %s187, %s188
          %s190 = smul.addr %s189, 8
          %s191 = scalar_lea.vmem %s0, %s190
          %s192 = smul.u32 2, %s24
        $region28: #{tpu_custom_call.1} parent=23 // pred_fallthru
          _
      $region24: #{tpu_custom_call.1} parent=5 // pred_fallthru
        _
      %p193 = scmp.le.s32.totalorder 1, %s17
      %p194 = scmp.lt.s32.totalorder %s17, 3
      %p195 = pnand %p193, %p194
      %p196 = pneg %p195
      // Predicated region
      $region29: #{tpu_custom_call.1} parent=5 // pred_check
        _
      $region30: #{tpu_custom_call.1} parent=5 // pred_check_branch
        %198 = sbr.rel (%p195) target = $region32
      $region31: #{tpu_custom_call.1} parent=5 // pred_region
        %s199 = ssub.s32 %s17, 1
        %s200 = smul.u32 2, %s26
        %p201 = scmp.lt.s32.totalorder %s27, 1
        %s202 = scalar_select %p201, %s27, 1
        %p203 = scmp.lt.s32.totalorder %s200, 1
        %s204 = scalar_select %p203, %s200, 1
        %s205 = smul.addr %s202, 2
        %s206 = sadd.s32 %s204, %s205
        %s207 = smul.addr %s206, 8
        %s208 = scalar_lea.vmem %s0, %s207
        %p209 = pneg %p57
        %p210 = pneg %p54
        %p211 = pneg %p78
        %p212 = pneg %p75
        %p213 = pneg %p99
        %p214 = pneg %p96
        %p215 = pneg %p127
        %p216 = pneg %p124
        %s217 = sand.u32 %s114, 1
        %s218 = scalar_lea.sflag [#allocation3], %s217
        %s219 = sand.u32 %s114, 1
        %s220 = smul.addr %s219, 32
        %s221 = scalar_lea.vmem [#allocation2], %s220
        %p222 = pneg %p155
        %p223 = pneg %p152
        %s224 = sand.u32 %s142, 1
        %s225 = scalar_lea.sflag [#allocation5], %s224
        %s226 = sand.u32 %s142, 1
        %s227 = smul.addr %s226, 2
        %s228 = scalar_lea.vmem [#allocation4], %s227
        %s229 = smul.u32 2, %s26
        %p230 = scmp.lt.s32.totalorder %s27, 1
        %s231 = scalar_select %p230, %s27, 1
        %p232 = scmp.lt.s32.totalorder %s229, 1
        %s233 = scalar_select %p232, %s229, 1
        %s234 = smul.addr %s231, 2
        %s235 = sadd.s32 %s233, %s234
        %s236 = smul.addr %s235, 8
        %s237 = scalar_lea.vmem %s0, %s236
        %s238 = smul.u32 2, %s26
        %s239 = smul.u32 2, %s26
        %s240 = smul.u32 2, %s26
        %v241 = vld [vmem:[%s1] sm:$0xff]
        %v242 = vld [vmem:[%s1 + $0x8] sm:$0xff]
        %v243 = vld [vmem:[%s237] sm:$0xff]
        %v244 = vld [vmem:[%s237 + $0x8] sm:$0xff]
        %v245 = vld [vmem:[%s2] sm:$0xff]
        %v246 = vld [vmem:[%s2 + $0x8] sm:$0xff]
        %248 = vset.pattern.permute.xlu0 0
        %249 = vperm.xlu0 %248, %v245
        %v250 = vpop.permute.xlu0 %249
        %253 = vset.pattern.permute.xlu0 0
        %254 = vperm.xlu0 %253, %v246
        %v255 = vpop.permute.xlu0 %254
        %vm257 = vcmask 64512
        %v259 = vsel %vm257, %v241, 0
        %v262 = vsel %vm257, %v242, 0
        %264 = vmatprep.subr.mxu0 %v244
        %265 = vmatpush1.msra.mxu0 %v243
        %266 = vmatprep.subr.mxu0 0.0
        %267 = vmatpush1.msra.mxu0 0.0
        %268 = vmatprep.subr.mxu0 0.0
        %269 = vmatpush1.msra.mxu0 0.0
        %270 = vmatprep.subr.mxu0 0.0
        %271 = vmatpush1.msra.mxu0 0.0
        %272 = vmatprep.subr.mxu0 0.0
        %273 = vmatpush1.msra.mxu0 0.0
        %274 = vmatprep.subr.mxu0 0.0
        %275 = vmatpush1.msra.mxu0 0.0
        %276 = vmatprep.subr.mxu0 0.0
        %277 = vmatpush1.msra.mxu0 0.0
        %278 = vmatprep.subr.mxu0 0.0
        %279 = vmatpush1.msra.mxu0 0.0
        %280 = vmatprep.subr.mxu0 0.0
        %281 = vmatpush1.msra.mxu0 0.0
        %282 = vmatprep.subr.mxu0 0.0
        %283 = vmatpush1.msra.mxu0 0.0
        %284 = vmatprep.subr.mxu0 0.0
        %285 = vmatpush1.msra.mxu0 0.0
        %286 = vmatprep.subr.mxu0 0.0
        %287 = vmatpush1.msra.mxu0 0.0
        %288 = vmatprep.subr.mxu0 0.0
        %289 = vmatpush1.msra.mxu0 0.0
        %290 = vmatprep.subr.mxu0 0.0
        %291 = vmatpush1.msra.mxu0 0.0
        %292 = vmatprep.subr.mxu0 0.0
        %293 = vmatpush1.msra.mxu0 0.0
        %294 = vmatprep.subr.mxu0 0.0
        %295 = vmatpush1.msra.mxu0 0.0
        %296 = vmatprep.subr.mxu0 0.0
        %297 = vmatpush1.msra.mxu0 0.0
        %298 = vmatprep.subr.mxu0 0.0
        %299 = vmatpush1.msra.mxu0 0.0
        %300 = vmatprep.subr.mxu0 0.0
        %301 = vmatpush1.msra.mxu0 0.0
        %302 = vmatprep.subr.mxu0 0.0
        %303 = vmatpush1.msra.mxu0 0.0
        %304 = vmatprep.subr.mxu0 0.0
        %305 = vmatpush1.msra.mxu0 0.0
        %306 = vmatprep.subr.mxu0 0.0
        %307 = vmatpush1.msra.mxu0 0.0
        %308 = vmatprep.subr.mxu0 0.0
        %309 = vmatpush1.msra.mxu0 0.0
        %310 = vmatprep.subr.mxu0 0.0
        %311 = vmatpush1.msra.mxu0 0.0
        %312 = vmatprep.subr.mxu0 0.0
        %313 = vmatpush1.msra.mxu0 0.0
        %314 = vmatprep.subr.mxu0 0.0
        %315 = vmatpush1.msra.mxu0 0.0
        %316 = vmatprep.subr.mxu0 0.0
        %317 = vmatpush1.msra.mxu0 0.0
        %318 = vmatprep.subr.mxu0 0.0
        %319 = vmatpush1.msra.mxu0 0.0
        %320 = vmatprep.subr.mxu0 0.0
        %321 = vmatpush1.msra.mxu0 0.0
        %322 = vmatprep.subr.mxu0 0.0
        %323 = vmatpush1.msra.mxu0 0.0
        %324 = vmatprep.subr.mxu0 0.0
        %325 = vmatpush1.msra.mxu0 0.0
        %326 = vmatprep.subr.mxu0 0.0
        %327 = vmatpush1.msra.mxu0 0.0
        %328 = vmatprep.mubr.f32.mxu0 0.0
        %329 = vmatmul.mubr.f32.gmra.mrb[0].mxu0 %v259
        %v330 = vpop.f32.mrb[0].mxu0
        %v331 = vadd.f32 %v250, %v330
        %v332 = vpop.f32.mrb[0].mxu0
        %v333 = vadd.f32 %v250, %v332
        %334 = vmatprep.mubr.f32.mxu0 0.0
        %335 = vmatmul.mubr.f32.gmra.mrb[0].mxu0 %v262
        %v336 = vpop.f32.mrb[0].mxu0
        %v337 = vadd.f32 %v255, %v336
        %v338 = vpop.f32.mrb[0].mxu0
        %v339 = vadd.f32 %v255, %v338
        %340 = vdwg.mxu0
        %341 = vst [vmem:[%s221] sm:$0xff] %v331
        %342 = vst [vmem:[%s221 + $0x8] sm:$0xff] %v333
        %343 = vst [vmem:[%s221 + $0x10] sm:$0xff] %v337
        %344 = vst [vmem:[%s221 + $0x18] sm:$0xff] %v339
        %v345 = vmax.f32 %v331, %v337
        %v346 = vrot.slane %v345, 4
        %v347 = vmax.f32 %v345, %v346
        %v348 = vrot.slane %v347, 2
        %v349 = vmax.f32 %v347, %v348
        %v350 = vrot.slane %v349, 1
        %v351 = vmax.f32 %v349, %v350
        %v352 = vmax.f32 %v333, %v339
        %v353 = vrot.slane %v352, 4
        %v354 = vmax.f32 %v352, %v353
        %v355 = vrot.slane %v354, 2
        %v356 = vmax.f32 %v354, %v355
        %v357 = vrot.slane %v356, 1
        %v358 = vmax.f32 %v356, %v357
        %v359 = vsub.f32 0.0, %v351
        %v360 = vsub.f32 0.0, %v358
        %v363 = vcombine.low %v359, %v360
        %v365 = vunpack.c.l.s4 1966171168
        %v366 = vunpack.c.0.s8 %v365
        %v367 = vlaneseq
        %v368 = vshrl.u32 %v367, 7
        %v369 = vsub.s32 %v366, %v368
        %v370 = vrot.slane %v363, %v369
        %v372 = vunpack.c.l.s4 1966171168
        %v373 = vunpack.c.0.s8 %v372
        %v374 = vlaneseq
        %v375 = vshrl.u32 %v374, 7
        %v376 = vsub.s32 %v373, %v375
        %v377 = vrot.slane %v370, %v376
        %v379 = vlaneseq
        %vm380 = vcmp.ge.s32.totalorder %v379, 0
        %vm381 = vcmp.lt.s32.totalorder %v379, 256
        %vm382 = vmand %vm380, %vm381
        %383 = vst.msk [vmem:[%s228] sm:$0x3] %vm382, %v377
        %s384 = sand.u32 %s114, 1
        %s385 = scalar_lea.sflag [#allocation3], %s384
        %s386 = sand.u32 %s114, 1
        %s387 = smul.addr %s386, 32
        %s388 = scalar_lea.vmem [#allocation2], %s387
        %s389 = sand.u32 %s142, 1
        %s390 = scalar_lea.sflag [#allocation5], %s389
        %s391 = sand.u32 %s142, 1
        %s392 = smul.addr %s391, 2
        %s393 = scalar_lea.vmem [#allocation4], %s392
        // Predicated region
        $region33: #{tpu_custom_call.1} parent=31 // pred_check
          %p394 = pneg %p124
        $region34: #{tpu_custom_call.1} parent=31 // pred_check_branch
          %396 = sbr.rel (%p394) target = $region36
        $region35: #{tpu_custom_call.1} parent=31 // pred_region
          %s397 = smul.u32 2, %s26
          %s399 = ssub.s32 512, 512
          %400 = vsyncadd %s385, %s399
          %s401 = smul.addr %s27, 4
          %s402 = sadd.s32 %s397, %s401
          %s403 = smul.addr %s402, 128
          %s404 = scalar_lea.hbm %s3, %s403
          %s405 = sshll.u32 %s388, 4
          %s406 = int_to_ptr.vmem [resolvable:$true] %s405
          %411 = dma.vmem_to_hbm [thread:$0]  %s406, 512, %s404, %s385, 256, 256, 16
        $region36: #{tpu_custom_call.1} parent=31 // pred_fallthru
          _
        // Predicated region
        $region37: #{tpu_custom_call.1} parent=31 // pred_check
          %p412 = pneg %p152
        $region38: #{tpu_custom_call.1} parent=31 // pred_check_branch
          %414 = sbr.rel (%p412) target = $region40
        $region39: #{tpu_custom_call.1} parent=31 // pred_region
          %s415 = smul.u32 2, %s26
          %s417 = ssub.s32 32, 32
          %418 = vsyncadd %s390, %s417
          %s419 = smul.addr %s27, 2
          %s420 = sadd.s32 %s415, %s419
          %s421 = smul.addr %s420, 16
          %s422 = scalar_lea.hbm %s4, %s421
          %s424 = sshll.u32 %s393, 4
          %s425 = int_to_ptr.vmem [resolvable:$true] %s424
          %427 = dma.vmem_to_hbm [thread:$0]  %s425, 32, %s422, %s390
        $region40: #{tpu_custom_call.1} parent=31 // pred_fallthru
          _
      $region32: #{tpu_custom_call.1} parent=5 // pred_fallthru
        _
      %p428 = scmp.le.s32.totalorder 2, %s17
      // Predicated region
      $region41: #{tpu_custom_call.1} parent=5 // pred_check
        %p429 = pneg %p428
      $region42: #{tpu_custom_call.1} parent=5 // pred_check_branch
        %431 = sbr.rel (%p429) target = $region44
      $region43: #{tpu_custom_call.1} parent=5 // pred_region
        %s432 = ssub.s32 %s17, 2
        // Predicated region
        $region45: #{tpu_custom_call.1} parent=43 // pred_check
          %p433 = pneg %p130
        $region46: #{tpu_custom_call.1} parent=43 // pred_check_branch
          %435 = sbr.rel (%p433) target = $region48
        $region47: #{tpu_custom_call.1} parent=43 // pred_region
          %s436 = sand.u32 %s115, 1
          %s437 = scalar_lea.sflag [#allocation3], %s436
          %s438 = sand.u32 %s115, 1
          %s439 = smul.addr %s438, 32
          %s440 = scalar_lea.vmem [#allocation2], %s439
          %441 = dma.done %s437, 512
        $region48: #{tpu_custom_call.1} parent=43 // pred_fallthru
          _
        // Predicated region
        $region49: #{tpu_custom_call.1} parent=43 // pred_check
          %p442 = pneg %p158
        $region50: #{tpu_custom_call.1} parent=43 // pred_check_branch
          %444 = sbr.rel (%p442) target = $region52
        $region51: #{tpu_custom_call.1} parent=43 // pred_region
          %s445 = sand.u32 %s143, 1
          %s446 = scalar_lea.sflag [#allocation5], %s445
          %s447 = sand.u32 %s143, 1
          %s448 = smul.addr %s447, 2
          %s449 = scalar_lea.vmem [#allocation4], %s448
          %450 = dma.done %s446, 32
        $region52: #{tpu_custom_call.1} parent=43 // pred_fallthru
          _
      $region44: #{tpu_custom_call.1} parent=5 // pred_fallthru
        _
    $region6: #{tpu_custom_call.1} parent=1 // loop_footer
      %s21 = sadd.s32 1, %s17
    $region7: #{tpu_custom_call.1} parent=1 // loop_footer_branch
      %16 = sbr.rel target = $region3
    $region8: #{tpu_custom_call.1} parent=1 // loop_exit
      _
    %451 = vsyncpa [#allocation3], 1
    %s452 = scalar_lea.sflag [#allocation3], 1
    %453 = vsyncpa %s452, 1
    %454 = vsyncpa [#allocation5], 1
    %s455 = scalar_lea.sflag [#allocation5], 1
    %456 = vsyncpa %s455, 1

</llo_original>
